<compile_context>
chip_gen: v5e
topology: v5e:2x2
jax: 0.10.0
libtpu: 0.0.40
codegen_flags: <defaults>
</compile_context>

<pallas_src>
import jax
import jax.numpy as jnp
from jax.experimental import pallas as pl
from jax.experimental.pallas import tpu as pltpu


def _round_up(a, b):
    return (a + b - 1) // b * b


def _choose_tiling(n_elems, n_emb, itemsize, *, lane_width=512,
                   target_out_tile_bytes=3 << 20):
    """Pick (lane width, slab rows, tile rows) for the lane/sublane-dense layout."""
    sub = max(8, 32 // itemsize)              # sublane granularity for this dtype
    cw = lane_width                           # lanes per slab row (multiple of 128)
    rows = max(sub, _round_up(pl.cdiv(n_elems, cw), sub))
    # Tile rows sized for ~target_out_tile_bytes per output block (E * tr * cw * B).
    tr = max(sub, (target_out_tile_bytes // (n_emb * cw * itemsize)) // sub * sub)
    tr = min(tr, rows)
    if rows > sub:
        # Keep >= 2 grid steps so v7x's two TensorCores can both take work.
        tr = min(tr, max(sub, _round_up(pl.cdiv(rows, 2), sub)))
    rows = _round_up(rows, tr)                # slab covers a whole number of tiles
    return cw, rows, tr


def _instruments_embedding_kernel(table_ref, ids_ref, o_ref):
    # table_ref: (d_instru, E)  float32 in SMEM  (scalar reads, loaded once)
    # ids_ref:   (TR, CW)       x.dtype in VMEM  (sublane+lane dense instrument ids)
    # o_ref:     (E, TR, CW)    x.dtype in VMEM  (dense embedding tiles)
    d_instru, E = table_ref.shape

    # maturity = id - 1, truncated toward zero like torch .long() on positive ids.
    idx = (ids_ref[...].astype(jnp.float32) - 1.0).astype(jnp.int32)   # (TR, CW)

    # Hoist all d_instru * E table scalars out of the select tree (cheap SMEM loads).
    tbl = [[table_ref[k, e] for e in range(E)] for k in range(d_instru)]

    # Balanced binary select tree over idx: depth ceil(log2(d_instru)) instead of a
    # d_instru-deep where-chain.  Comparison masks are shared across all E dims.
    masks = {}

    def _mask(mid):
        if mid not in masks:
            masks[mid] = idx < mid
        return masks[mid]

    def _select(vals, lo, hi):
        if hi - lo == 1:
            return vals[lo]
        mid = (lo + hi) // 2
        return jnp.where(_mask(mid), _select(vals, lo, mid), _select(vals, mid, hi))

    for e in range(E):
        val = _select([tbl[k][e] for k in range(d_instru)], 0, d_instru)
        if getattr(val, "ndim", 0) == 0:           # d_instru == 1 edge case
            val = jnp.full(idx.shape, val, dtype=jnp.float32)
        # Whole dense (TR, CW) tile store, cast to the output dtype at the store.
        o_ref[e] = val.astype(o_ref.dtype)


def instruments_embedding_forward(x, emb_table):
    """x: [N, T, F]; emb_table: [d_instru, E] float32 -> [N, T, (F-1)+E] in x.dtype."""
    N, T, F = x.shape
    d_instru, E = emb_table.shape
    L = N * T
    dt = x.dtype
    itemsize = jnp.dtype(dt).itemsize

    cw, rows, tr = _choose_tiling(L, E, itemsize)
    Lp = rows * cw

    # Sublane/lane-dense id slab; pad with a valid id (1 -> index 0), padded columns
    # are sliced off below.  Ids stay in x.dtype (no f32 up-cast round trip).
    ids = x[:, :, 0].reshape(L)
    if Lp != L:
        ids = jnp.pad(ids, (0, Lp - L), constant_values=1)
    ids = ids.reshape(rows, cw)

    emb_slab = pl.pallas_call(
        _instruments_embedding_kernel,
        out_shape=jax.ShapeDtypeStruct((E, rows, cw), dt),
        grid_spec=pltpu.PrefetchScalarGridSpec(
            num_scalar_prefetch=0,
            grid=(rows // tr,),
            in_specs=[
                # Tiny (d_instru, E) table: whole array in SMEM, no pipelining.
                pl.BlockSpec(memory_space=pltpu.MemorySpace.SMEM),
                # Dense (TR, CW) id tiles.
                pl.BlockSpec((tr, cw), lambda r: (r, 0)),
            ],
            out_specs=pl.BlockSpec((E, tr, cw), lambda r: (0, r, 0)),
        ),
        compiler_params=pltpu.CompilerParams(
            dimension_semantics=("parallel",),
            vmem_limit_bytes=32 * 1024 * 1024,
        ),
    )(emb_table, ids)

    # Layout plumbing + passthrough copy handled by XLA (identity data movement;
    # keeping it out of the kernel avoids doubling the kernel's HBM traffic).
    emb = emb_slab.reshape(E, Lp)[:, :L].T.reshape(N, T, E)
    return jnp.concatenate([x[:, :, 1:], emb], axis=-1)


def reference_forward(x, emb_table):
    idx = (x[:, :, 0].astype(jnp.float32) - 1.0).astype(jnp.int32)
    emb = emb_table[idx].astype(x.dtype)
    return jnp.concatenate([x[:, :, 1:], emb], axis=-1)


if __name__ == "__main__":
    # Module hyperparameters (defaults of _InstrumentsEmbedding).
    d_feat = 6          # feature dim F of the input x
    d_instru = 6        # num_embeddings
    embedding_dim = 3   # E

    # Small synthetic shapes: batch=2, seq=8, features=d_feat.
    N, T, F = 2, 8, d_feat

    key = jax.random.PRNGKey(0)
    k_feat, k_idx, k_emb = jax.random.split(key, 3)

    # Deterministic parameter init (nn.Embedding weight ~ N(0,1) in PyTorch).
    emb_table = jax.random.normal(k_emb, (d_instru, embedding_dim), dtype=jnp.float32)

    # Column 0 holds instrument ids in [1, d_instru]; remaining F-1 columns are
    # ordinary float features.
    instru_ids = jax.random.randint(k_idx, (N, T, 1), 1, d_instru + 1).astype(jnp.float32)
    feats = jax.random.normal(k_feat, (N, T, F - 1), dtype=jnp.float32)
    x = jnp.concatenate([instru_ids, feats], axis=-1)

    fwd = jax.jit(instruments_embedding_forward)
    out = jax.block_until_ready(fwd(x, emb_table))

    ref = reference_forward(x, emb_table)
    assert out.shape == (N, T, (F - 1) + embedding_dim), out.shape
    assert jnp.allclose(out, ref, atol=1e-5, rtol=1e-5), "mismatch vs reference"

    print("KERNEL_OK")
</pallas_src>

<mosaic_0001>
module attributes {stable_mosaic.version = 11 : i64} {
  func.func @_instruments_embedding_kernel(%arg0: i32, %arg1: memref<6x3xf32, #tpu.memory_space<smem>>, %arg2: memref<8x512xf32, #tpu.memory_space<vmem>>, %arg3: memref<3x8x512xf32, #tpu.memory_space<vmem>>) attributes {dimension_semantics = [#tpu.dimension_semantics<parallel>], iteration_bounds = array<i64: 1>, scalar_prefetch = 0 : i64, scratch_operands = 0 : i64, tpu.core_type = #tpu.core_type<tc>, window_params = [{transform_indices = @transform_0, window_bounds = array<i64: 6, 3>}, {transform_indices = @transform_1, window_bounds = array<i64: 8, 512>}, {transform_indices = @transform_2, window_bounds = array<i64: 3, 8, 512>}]} {
    %c0 = arith.constant 0 : index
    %c0_0 = arith.constant 0 : index
    %0 = vector.load %arg2[%c0, %c0_0] : memref<8x512xf32, #tpu.memory_space<vmem>>, vector<8x512xf32>
    %cst = arith.constant 1.000000e+00 : f32
    %1 = vector.broadcast %cst : f32 to vector<8x512xf32>
    %2 = arith.subf %0, %1 : vector<8x512xf32>
    %3 = arith.fptosi %2 : vector<8x512xf32> to vector<8x512xi32>
    %c0_1 = arith.constant 0 : index
    %c0_2 = arith.constant 0 : index
    %4 = memref.load %arg1[%c0_1, %c0_2] : memref<6x3xf32, #tpu.memory_space<smem>>
    %c0_3 = arith.constant 0 : index
    %c1 = arith.constant 1 : index
    %5 = memref.load %arg1[%c0_3, %c1] : memref<6x3xf32, #tpu.memory_space<smem>>
    %c0_4 = arith.constant 0 : index
    %c2 = arith.constant 2 : index
    %6 = memref.load %arg1[%c0_4, %c2] : memref<6x3xf32, #tpu.memory_space<smem>>
    %c1_5 = arith.constant 1 : index
    %c0_6 = arith.constant 0 : index
    %7 = memref.load %arg1[%c1_5, %c0_6] : memref<6x3xf32, #tpu.memory_space<smem>>
    %c1_7 = arith.constant 1 : index
    %c1_8 = arith.constant 1 : index
    %8 = memref.load %arg1[%c1_7, %c1_8] : memref<6x3xf32, #tpu.memory_space<smem>>
    %c1_9 = arith.constant 1 : index
    %c2_10 = arith.constant 2 : index
    %9 = memref.load %arg1[%c1_9, %c2_10] : memref<6x3xf32, #tpu.memory_space<smem>>
    %c2_11 = arith.constant 2 : index
    %c0_12 = arith.constant 0 : index
    %10 = memref.load %arg1[%c2_11, %c0_12] : memref<6x3xf32, #tpu.memory_space<smem>>
    %c2_13 = arith.constant 2 : index
    %c1_14 = arith.constant 1 : index
    %11 = memref.load %arg1[%c2_13, %c1_14] : memref<6x3xf32, #tpu.memory_space<smem>>
    %c2_15 = arith.constant 2 : index
    %c2_16 = arith.constant 2 : index
    %12 = memref.load %arg1[%c2_15, %c2_16] : memref<6x3xf32, #tpu.memory_space<smem>>
    %c3 = arith.constant 3 : index
    %c0_17 = arith.constant 0 : index
    %13 = memref.load %arg1[%c3, %c0_17] : memref<6x3xf32, #tpu.memory_space<smem>>
    %c3_18 = arith.constant 3 : index
    %c1_19 = arith.constant 1 : index
    %14 = memref.load %arg1[%c3_18, %c1_19] : memref<6x3xf32, #tpu.memory_space<smem>>
    %c3_20 = arith.constant 3 : index
    %c2_21 = arith.constant 2 : index
    %15 = memref.load %arg1[%c3_20, %c2_21] : memref<6x3xf32, #tpu.memory_space<smem>>
    %c4 = arith.constant 4 : index
    %c0_22 = arith.constant 0 : index
    %16 = memref.load %arg1[%c4, %c0_22] : memref<6x3xf32, #tpu.memory_space<smem>>
    %c4_23 = arith.constant 4 : index
    %c1_24 = arith.constant 1 : index
    %17 = memref.load %arg1[%c4_23, %c1_24] : memref<6x3xf32, #tpu.memory_space<smem>>
    %c4_25 = arith.constant 4 : index
    %c2_26 = arith.constant 2 : index
    %18 = memref.load %arg1[%c4_25, %c2_26] : memref<6x3xf32, #tpu.memory_space<smem>>
    %c5 = arith.constant 5 : index
    %c0_27 = arith.constant 0 : index
    %19 = memref.load %arg1[%c5, %c0_27] : memref<6x3xf32, #tpu.memory_space<smem>>
    %c5_28 = arith.constant 5 : index
    %c1_29 = arith.constant 1 : index
    %20 = memref.load %arg1[%c5_28, %c1_29] : memref<6x3xf32, #tpu.memory_space<smem>>
    %c5_30 = arith.constant 5 : index
    %c2_31 = arith.constant 2 : index
    %21 = memref.load %arg1[%c5_30, %c2_31] : memref<6x3xf32, #tpu.memory_space<smem>>
    %c3_i32 = arith.constant 3 : i32
    %22 = vector.broadcast %c3_i32 : i32 to vector<8x512xi32>
    %23 = arith.cmpi slt, %3, %22 : vector<8x512xi32>
    %c1_i32 = arith.constant 1 : i32
    %24 = vector.broadcast %c1_i32 : i32 to vector<8x512xi32>
    %25 = arith.cmpi slt, %3, %24 : vector<8x512xi32>
    %c2_i32 = arith.constant 2 : i32
    %26 = vector.broadcast %c2_i32 : i32 to vector<8x512xi32>
    %27 = arith.cmpi slt, %3, %26 : vector<8x512xi32>
    %28 = vector.broadcast %7 : f32 to vector<8x512xf32>
    %29 = vector.broadcast %10 : f32 to vector<8x512xf32>
    %30 = arith.select %27, %28, %29 : vector<8x512xi1>, vector<8x512xf32>
    %31 = vector.broadcast %4 : f32 to vector<8x512xf32>
    %32 = arith.select %25, %31, %30 : vector<8x512xi1>, vector<8x512xf32>
    %c4_i32 = arith.constant 4 : i32
    %33 = vector.broadcast %c4_i32 : i32 to vector<8x512xi32>
    %34 = arith.cmpi slt, %3, %33 : vector<8x512xi32>
    %c5_i32 = arith.constant 5 : i32
    %35 = vector.broadcast %c5_i32 : i32 to vector<8x512xi32>
    %36 = arith.cmpi slt, %3, %35 : vector<8x512xi32>
    %37 = vector.broadcast %16 : f32 to vector<8x512xf32>
    %38 = vector.broadcast %19 : f32 to vector<8x512xf32>
    %39 = arith.select %36, %37, %38 : vector<8x512xi1>, vector<8x512xf32>
    %40 = vector.broadcast %13 : f32 to vector<8x512xf32>
    %41 = arith.select %34, %40, %39 : vector<8x512xi1>, vector<8x512xf32>
    %42 = arith.select %23, %32, %41 : vector<8x512xi1>, vector<8x512xf32>
    %c0_32 = arith.constant 0 : index
    %c0_33 = arith.constant 0 : index
    %c0_34 = arith.constant 0 : index
    %43 = vector.load %arg3[%c0_32, %c0_33, %c0_34] : memref<3x8x512xf32, #tpu.memory_space<vmem>>, vector<1x8x512xf32>
    %44 = vector.shape_cast %43 : vector<1x8x512xf32> to vector<8x512xf32>
    %45 = vector.shape_cast %42 : vector<8x512xf32> to vector<1x8x512xf32>
    tpu.vector_store %arg3[%c0_32, %c0_33, %c0_34], %45 {strides = array<i32>} : memref<3x8x512xf32, #tpu.memory_space<vmem>>, vector<1x8x512xf32>,
    %46 = vector.broadcast %8 : f32 to vector<8x512xf32>
    %47 = vector.broadcast %11 : f32 to vector<8x512xf32>
    %48 = arith.select %27, %46, %47 : vector<8x512xi1>, vector<8x512xf32>
    %49 = vector.broadcast %5 : f32 to vector<8x512xf32>
    %50 = arith.select %25, %49, %48 : vector<8x512xi1>, vector<8x512xf32>
    %51 = vector.broadcast %17 : f32 to vector<8x512xf32>
    %52 = vector.broadcast %20 : f32 to vector<8x512xf32>
    %53 = arith.select %36, %51, %52 : vector<8x512xi1>, vector<8x512xf32>
    %54 = vector.broadcast %14 : f32 to vector<8x512xf32>
    %55 = arith.select %34, %54, %53 : vector<8x512xi1>, vector<8x512xf32>
    %56 = arith.select %23, %50, %55 : vector<8x512xi1>, vector<8x512xf32>
    %c1_35 = arith.constant 1 : index
    %c0_36 = arith.constant 0 : index
    %c0_37 = arith.constant 0 : index
    %57 = vector.load %arg3[%c1_35, %c0_36, %c0_37] : memref<3x8x512xf32, #tpu.memory_space<vmem>>, vector<1x8x512xf32>
    %58 = vector.shape_cast %57 : vector<1x8x512xf32> to vector<8x512xf32>
    %59 = vector.shape_cast %56 : vector<8x512xf32> to vector<1x8x512xf32>
    tpu.vector_store %arg3[%c1_35, %c0_36, %c0_37], %59 {strides = array<i32>} : memref<3x8x512xf32, #tpu.memory_space<vmem>>, vector<1x8x512xf32>,
    %60 = vector.broadcast %9 : f32 to vector<8x512xf32>
    %61 = vector.broadcast %12 : f32 to vector<8x512xf32>
    %62 = arith.select %27, %60, %61 : vector<8x512xi1>, vector<8x512xf32>
    %63 = vector.broadcast %6 : f32 to vector<8x512xf32>
    %64 = arith.select %25, %63, %62 : vector<8x512xi1>, vector<8x512xf32>
    %65 = vector.broadcast %18 : f32 to vector<8x512xf32>
    %66 = vector.broadcast %21 : f32 to vector<8x512xf32>
    %67 = arith.select %36, %65, %66 : vector<8x512xi1>, vector<8x512xf32>
    %68 = vector.broadcast %15 : f32 to vector<8x512xf32>
    %69 = arith.select %34, %68, %67 : vector<8x512xi1>, vector<8x512xf32>
    %70 = arith.select %23, %64, %69 : vector<8x512xi1>, vector<8x512xf32>
    %c2_38 = arith.constant 2 : index
    %c0_39 = arith.constant 0 : index
    %c0_40 = arith.constant 0 : index
    %71 = vector.load %arg3[%c2_38, %c0_39, %c0_40] : memref<3x8x512xf32, #tpu.memory_space<vmem>>, vector<1x8x512xf32>
    %72 = vector.shape_cast %71 : vector<1x8x512xf32> to vector<8x512xf32>
    %73 = vector.shape_cast %70 : vector<8x512xf32> to vector<1x8x512xf32>
    tpu.vector_store %arg3[%c2_38, %c0_39, %c0_40], %73 {strides = array<i32>} : memref<3x8x512xf32, #tpu.memory_space<vmem>>, vector<1x8x512xf32>,
    return
  }
  func.func @transform_0(%arg0: i32) -> (i32, i32) {
    %c0_i32 = arith.constant 0 : i32
    %c0_i32_0 = arith.constant 0 : i32
    %c0_i32_1 = arith.constant 0 : i32
    return %c0_i32, %c0_i32_0 : i32, i32
  }
  func.func @transform_1(%arg0: i32) -> (i32, i32) {
    %c0_i32 = arith.constant 0 : i32
    %c0_i32_0 = arith.constant 0 : i32
    return %arg0, %c0_i32 : i32, i32
  }
  func.func @transform_2(%arg0: i32) -> (i32, i32, i32) {
    %c0_i32 = arith.constant 0 : i32
    %c0_i32_0 = arith.constant 0 : i32
    %c0_i32_1 = arith.constant 0 : i32
    return %c0_i32, %arg0, %c0_i32_0 : i32, i32, i32
  }
}

</mosaic_0001>

<llo_original>
// kernel: squeeze.1
$region0: #{squeeze.1}
  %s0 = inlined_call_operand.vmem [shape: f32[2,8,1], index: 0, kind: input, shape index: {}]
  %s1 = inlined_call_operand.vmem [shape: f32[16], index: 1, kind: output, shape index: {}]
  $region1: #{squeeze.1} parent=0
    #allocation0 [shape = 'u8[4096]{0}', space=vmem, size = 0x1000, scoped, tag = 'scoped mem for output reshape']
    #allocation1 [shape = 'u8[4096]{0}', space=vmem, size = 0x1000, scoped, tag = 'scoped mem for input reshape']
    %s3 = ssub.s32 4, 1
    %v4 = vld [vmem:[%s0] sm:%s3]
    %5 = vst [vmem:[#allocation1] sm:%s3] %v4
    %v6 = vld [vmem:[#allocation1] sm:$0x1]
    %vm7 = vcmask 64512
    %8 = vst.msk [vmem:[#allocation0] sm:$0x1] %vm7, %v6
    %s9 = scalar_lea.vmem [#allocation1], 1
    %v10 = vld [vmem:[%s9] sm:$0x1]
    %11 = vrot.lane.b32.xlu0 %v10, 8
    %v12 = vpop.permute.xlu0 %11
    %vm13 = vcmask 130112
    %14 = vst.msk [vmem:[#allocation0] sm:$0x1] %vm13, %v12
    %s16 = ssub.s32 2, 1
    %v17 = vld [vmem:[#allocation0] sm:%s16]
    %s19 = ssub.s32 2, 1
    %20 = vst [vmem:[%s1] sm:%s19] %v17

// kernel: instruments_embedding_forward.1
$region0: #{instruments_embedding_forward.1}
  #allocation0 [shape = 'u32[]', space=smem, size = 0x4, offset = 0x4, fixed_abs, tag = 'smem constant byte address 0x4 - core index']
  #allocation1 [shape = 'u32[72,128]{1,0:T(1,128)}', space=vmem, size = 0x9000, scoped, tag = 'internal scratch']
  %s0 = inlined_call_operand.vmem [shape: f32[6,3], index: 0, kind: input, shape index: {}]
  %s1 = inlined_call_operand.vmem [shape: f32[8,512], index: 1, kind: input, shape index: {}]
  %s2 = inlined_call_operand.vmem [shape: f32[3,8,512], index: 2, kind: output, shape index: {}]
  %s3 = sld [smem:[#allocation0]]
  $region22: #{instruments_embedding_forward.1} parent=0
    _
  %s5 = ssub.s32 1, %s3
  %s6 = scalar_select 0, %s5, %s3
  $region1: #{instruments_embedding_forward.1} parent=0
    #allocation2 [shape = 'u8[4096]{0}', space=smem, size = 0x1000, scoped, tag = 'input window, operand 0, single buffered']
    #allocation3 [shape = 's32[1]{0}', space=sflag, size = 0x4, scoped, tag = 'scoped memory for instruments_embedding_forward.1']
    %7 = vsyncpa [#allocation3], 0
    // Predicated region
    $region2: #{instruments_embedding_forward.1} parent=1 // pred_check
      _
    $region3: #{instruments_embedding_forward.1} parent=1 // pred_check_branch
      %9 = sbr.rel (0) target = $region5
    $region4: #{instruments_embedding_forward.1} parent=1 // pred_region
      %11 = vsyncadd [#allocation3], 0
      %s13 = sshll.u32 %s0, 4
      %s14 = int_to_ptr.vmem [resolvable:$true] %s13
      %16 = dma.vmem_to_smem %s14, 128, [#allocation2], [#allocation3]
    $region5: #{instruments_embedding_forward.1} parent=1 // pred_fallthru
      _
    // Predicated region
    $region6: #{instruments_embedding_forward.1} parent=1 // pred_check
      _
    $region7: #{instruments_embedding_forward.1} parent=1 // pred_check_branch
      %18 = sbr.rel (0) target = $region9
    $region8: #{instruments_embedding_forward.1} parent=1 // pred_region
      _
    $region9: #{instruments_embedding_forward.1} parent=1 // pred_fallthru
      _
    // Predicated region
    $region10: #{instruments_embedding_forward.1} parent=1 // pred_check
      _
    $region11: #{instruments_embedding_forward.1} parent=1 // pred_check_branch
      %20 = sbr.rel (0) target = $region13
    $region12: #{instruments_embedding_forward.1} parent=1 // pred_region
      %22 = dma.done [#allocation3], 128
    $region13: #{instruments_embedding_forward.1} parent=1 // pred_fallthru
      _
    %23 = sfence
    %v24 = vld [vmem:[%s1] sm:$0xff]
    %v25 = vld [vmem:[%s1 + $0x8] sm:$0xff]
    %v26 = vld [vmem:[%s1 + $0x10] sm:$0xff]
    %v27 = vld [vmem:[%s1 + $0x18] sm:$0xff]
    %v28 = vsub.f32 %v24, 1.0
    %v29 = vsub.f32 %v25, 1.0
    %v30 = vsub.f32 %v26, 1.0
    %v31 = vsub.f32 %v27, 1.0
    %v32 = vcvt.f32.s32.to.zero.pseudo %v28
    %v33 = vcvt.f32.s32.to.zero.pseudo %v29
    %v34 = vcvt.f32.s32.to.zero.pseudo %v30
    %v35 = vcvt.f32.s32.to.zero.pseudo %v31
    %s36 = sld [smem:[#allocation2]]
    %s37 = sld [smem:[#allocation2 + $0x1]]
    %s38 = sld [smem:[#allocation2 + $0x2]]
    %s39 = sld [smem:[#allocation2 + $0x80]]
    %s40 = sld [smem:[#allocation2 + $0x81]]
    %s41 = sld [smem:[#allocation2 + $0x82]]
    %s42 = sld [smem:[#allocation2 + $0x100]]
    %s43 = sld [smem:[#allocation2 + $0x101]]
    %s44 = sld [smem:[#allocation2 + $0x102]]
    %s45 = sld [smem:[#allocation2 + $0x180]]
    %s46 = sld [smem:[#allocation2 + $0x181]]
    %s47 = sld [smem:[#allocation2 + $0x182]]
    %s48 = sld [smem:[#allocation2 + $0x200]]
    %s49 = sld [smem:[#allocation2 + $0x201]]
    %s50 = sld [smem:[#allocation2 + $0x202]]
    %s51 = sld [smem:[#allocation2 + $0x280]]
    %s52 = sld [smem:[#allocation2 + $0x281]]
    %s53 = sld [smem:[#allocation2 + $0x282]]
    %vm54 = vcmp.lt.s32.totalorder %v32, 3
    %vm55 = vcmp.lt.s32.totalorder %v33, 3
    %vm56 = vcmp.lt.s32.totalorder %v34, 3
    %vm57 = vcmp.lt.s32.totalorder %v35, 3
    %vm58 = vcmp.lt.s32.totalorder %v32, 1
    %vm59 = vcmp.lt.s32.totalorder %v33, 1
    %vm60 = vcmp.lt.s32.totalorder %v34, 1
    %vm61 = vcmp.lt.s32.totalorder %v35, 1
    %vm62 = vcmp.lt.s32.totalorder %v32, 2
    %vm63 = vcmp.lt.s32.totalorder %v33, 2
    %vm64 = vcmp.lt.s32.totalorder %v34, 2
    %vm65 = vcmp.lt.s32.totalorder %v35, 2
    %v66 = vstv %s39
    %v67 = vstv %s42
    %v68 = vsel %vm62, %v66, %v67
    %v69 = vsel %vm63, %v66, %v67
    %v70 = vsel %vm64, %v66, %v67
    %v71 = vsel %vm65, %v66, %v67
    %v72 = vstv %s36
    %v73 = vsel %vm58, %v72, %v68
    %v74 = vsel %vm59, %v72, %v69
    %v75 = vsel %vm60, %v72, %v70
    %v76 = vsel %vm61, %v72, %v71
    %vm77 = vcmp.lt.s32.totalorder %v32, 4
    %vm78 = vcmp.lt.s32.totalorder %v33, 4
    %vm79 = vcmp.lt.s32.totalorder %v34, 4
    %vm80 = vcmp.lt.s32.totalorder %v35, 4
    %vm81 = vcmp.lt.s32.totalorder %v32, 5
    %vm82 = vcmp.lt.s32.totalorder %v33, 5
    %vm83 = vcmp.lt.s32.totalorder %v34, 5
    %vm84 = vcmp.lt.s32.totalorder %v35, 5
    %v85 = vstv %s48
    %v86 = vstv %s51
    %v87 = vsel %vm81, %v85, %v86
    %v88 = vsel %vm82, %v85, %v86
    %v89 = vsel %vm83, %v85, %v86
    %v90 = vsel %vm84, %v85, %v86
    %v91 = vstv %s45
    %v92 = vsel %vm77, %v91, %v87
    %v93 = vsel %vm78, %v91, %v88
    %v94 = vsel %vm79, %v91, %v89
    %v95 = vsel %vm80, %v91, %v90
    %v96 = vsel %vm54, %v73, %v92
    %v97 = vsel %vm55, %v74, %v93
    %v98 = vsel %vm56, %v75, %v94
    %v99 = vsel %vm57, %v76, %v95
    %100 = vst [vmem:[%s2] sm:$0xff] %v96
    %101 = vst [vmem:[%s2 + $0x8] sm:$0xff] %v97
    %102 = vst [vmem:[%s2 + $0x10] sm:$0xff] %v98
    %103 = vst [vmem:[%s2 + $0x18] sm:$0xff] %v99
    %v104 = vstv %s40
    %v105 = vstv %s43
    %v106 = vsel %vm62, %v104, %v105
    %v107 = vsel %vm63, %v104, %v105
    %v108 = vsel %vm64, %v104, %v105
    %v109 = vsel %vm65, %v104, %v105
    %v110 = vstv %s37
    %v111 = vsel %vm58, %v110, %v106
    %v112 = vsel %vm59, %v110, %v107
    %v113 = vsel %vm60, %v110, %v108
    %v114 = vsel %vm61, %v110, %v109
    %v115 = vstv %s49
    %v116 = vstv %s52
    %v117 = vsel %vm81, %v115, %v116
    %v118 = vsel %vm82, %v115, %v116
    %v119 = vsel %vm83, %v115, %v116
    %v120 = vsel %vm84, %v115, %v116
    %v121 = vstv %s46
    %v122 = vsel %vm77, %v121, %v117
    %v123 = vsel %vm78, %v121, %v118
    %v124 = vsel %vm79, %v121, %v119
    %v125 = vsel %vm80, %v121, %v120
    %v126 = vsel %vm54, %v111, %v122
    %v127 = vsel %vm55, %v112, %v123
    %v128 = vsel %vm56, %v113, %v124
    %v129 = vsel %vm57, %v114, %v125
    %s130 = scalar_lea.vmem %s2, 32
    %131 = vst [vmem:[%s130] sm:$0xff] %v126
    %132 = vst [vmem:[%s130 + $0x8] sm:$0xff] %v127
    %133 = vst [vmem:[%s130 + $0x10] sm:$0xff] %v128
    %134 = vst [vmem:[%s130 + $0x18] sm:$0xff] %v129
    %v135 = vstv %s41
    %v136 = vstv %s44
    %v137 = vsel %vm62, %v135, %v136
    %v138 = vsel %vm63, %v135, %v136
    %v139 = vsel %vm64, %v135, %v136
    %v140 = vsel %vm65, %v135, %v136
    %v141 = vstv %s38
    %v142 = vsel %vm58, %v141, %v137
    %v143 = vsel %vm59, %v141, %v138
    %v144 = vsel %vm60, %v141, %v139
    %v145 = vsel %vm61, %v141, %v140
    %v146 = vstv %s50
    %v147 = vstv %s53
    %v148 = vsel %vm81, %v146, %v147
    %v149 = vsel %vm82, %v146, %v147
    %v150 = vsel %vm83, %v146, %v147
    %v151 = vsel %vm84, %v146, %v147
    %v152 = vstv %s47
    %v153 = vsel %vm77, %v152, %v148
    %v154 = vsel %vm78, %v152, %v149
    %v155 = vsel %vm79, %v152, %v150
    %v156 = vsel %vm80, %v152, %v151
    %v157 = vsel %vm54, %v142, %v153
    %v158 = vsel %vm55, %v143, %v154
    %v159 = vsel %vm56, %v144, %v155
    %v160 = vsel %vm57, %v145, %v156
    %s161 = scalar_lea.vmem %s2, 64
    %162 = vst [vmem:[%s161] sm:$0xff] %v157
    %163 = vst [vmem:[%s161 + $0x8] sm:$0xff] %v158
    %164 = vst [vmem:[%s161 + $0x10] sm:$0xff] %v159
    %165 = vst [vmem:[%s161 + $0x18] sm:$0xff] %v160
    // Predicated region
    $region14: #{instruments_embedding_forward.1} parent=1 // pred_check
      _
    $region15: #{instruments_embedding_forward.1} parent=1 // pred_check_branch
      %167 = sbr.rel (0) target = $region17
    $region16: #{instruments_embedding_forward.1} parent=1 // pred_region
      _
    $region17: #{instruments_embedding_forward.1} parent=1 // pred_fallthru
      _
    // Predicated region
    $region18: #{instruments_embedding_forward.1} parent=1 // pred_check
      _
    $region19: #{instruments_embedding_forward.1} parent=1 // pred_check_branch
      %169 = sbr.rel (0) target = $region21
    $region20: #{instruments_embedding_forward.1} parent=1 // pred_region
      _
    $region21: #{instruments_embedding_forward.1} parent=1 // pred_fallthru
      _
    %170 = vsyncpa [#allocation3], 1

</llo_original>
